<compile_context>
chip_gen: v5e
topology: v5e:2x2
jax: 0.10.0
libtpu: 0.0.40
codegen_flags: <defaults>
</compile_context>

<pallas_src>
import functools
import math

import jax
import jax.numpy as jnp
from jax.experimental import pallas as pl
from jax.experimental.pallas import tpu as pltpu


# ----------------------------------------------------------------------------
# Helpers
# ----------------------------------------------------------------------------
def _layernorm(x, w, b, eps=1e-5):
    # x: (M, D); w, b: (1, D).  Single traversal: var = E[x^2] - E[x]^2.
    mean = jnp.mean(x, axis=-1, keepdims=True)
    mean_sq = jnp.mean(x * x, axis=-1, keepdims=True)
    var = mean_sq - mean * mean
    return (x - mean) * jax.lax.rsqrt(var + eps) * w + b


def _vmem_limit(nbytes):
    # Clamp against the actual chip's VMEM capacity (v7x has only 64 MiB),
    # leaving ~8 MiB headroom for the compiler's internal scratch.
    cap = 128 << 20
    try:
        cap = int(getattr(pltpu.get_tpu_info(), "vmem_capacity_bytes", cap))
    except Exception:
        pass
    hi = max(cap - (8 << 20), 16 << 20)
    return int(min(max(nbytes, 32 << 20), hi))


def _pick_bt(B, L):
    # Batch tile for the fused transformer: smallest divisor of B with
    # bt*L >= 256 (fills the MXU rows), but keep >= 2 parallel grid steps so
    # both v7x TensorCores stay busy; otherwise largest divisor with >=2 steps.
    divs = [d for d in range(1, B + 1) if B % d == 0]
    cand = [d for d in divs if d * L >= 256 and (B // d >= 2 or B < 2)]
    if cand:
        return min(cand)
    cand2 = [d for d in divs if B // d >= 2]
    if cand2:
        return max(cand2)
    return B


def _pick_bp(B, N):
    # Batch tile for the patch-embed matmul: target >= 512 rows per step.
    divs = [d for d in range(1, B + 1) if B % d == 0]
    cand = [d for d in divs if d * N >= 512]
    return min(cand) if cand else max(divs)


# ----------------------------------------------------------------------------
# Kernel 1: patch embedding matmul + bias + sincos positional embedding.
#   grid tiles over batch; pos (N, D) is a constant resident block (no tile /
#   no HBM re-read), patches arrive in bf16.
# ----------------------------------------------------------------------------
def patch_embed_kernel(x_ref, w_ref, b_ref, pos_ref, o_ref):
    # x_ref: (bp, N, K) bf16; w_ref: (K, D) bf16; b_ref: (1, D) f32; pos_ref: (N, D) f32
    bp, N, K = x_ref.shape
    D = w_ref.shape[1]
    y = jnp.dot(x_ref[...].reshape(bp * N, K), w_ref[...],
                preferred_element_type=jnp.float32)
    pos_plus_b = pos_ref[...] + b_ref[...]                      # (N, D)
    o_ref[...] = y.reshape(bp, N, D) + pos_plus_b[None, :, :]


def patch_embed_pos(patches, w, b, pos):
    B, N, K = patches.shape
    D = w.shape[1]
    bp = _pick_bp(B, N)

    vmem_bytes = _vmem_limit(
        2 * (2 * bp * N * K + 4 * bp * N * D)      # double-buffered x + out
        + 2 * 2 * K * D                             # bf16 weight (2x buffer)
        + 4 * N * D + 4 * D                         # pos + bias (resident)
        + (4 << 20))

    return pl.pallas_call(
        patch_embed_kernel,
        out_shape=jax.ShapeDtypeStruct((B, N, D), jnp.float32),
        grid=(B // bp,),
        in_specs=[
            pl.BlockSpec((bp, N, K), lambda i: (i, 0, 0)),
            pl.BlockSpec((K, D), lambda i: (0, 0)),
            pl.BlockSpec((1, D), lambda i: (0, 0)),
            pl.BlockSpec((N, D), lambda i: (0, 0)),
        ],
        out_specs=pl.BlockSpec((bp, N, D), lambda i: (i, 0, 0)),
        compiler_params=pltpu.CompilerParams(
            dimension_semantics=("parallel",),
            vmem_limit_bytes=vmem_bytes),
    )(patches, w, b, pos)


# ----------------------------------------------------------------------------
# Kernel 2: fused transformer stack.
#   grid = (B//bt, depth); batch-tile axis "parallel" (megacore), depth axis
#   "arbitrary".  The residual stream (bt*L, D) lives in a VMEM scratch,
#   per-layer weights (leading depth axis) stream per grid step, and the final
#   LayerNorm runs on the last depth step.
# ----------------------------------------------------------------------------
def fused_blocks_kernel(x_ref,
                        ln1w_ref, ln1b_ref, qkvw_ref, qkvb_ref,
                        projw_ref, projb_ref, ln2w_ref, ln2b_ref,
                        fc1w_ref, fc1b_ref, fc2w_ref, fc2b_ref,
                        normw_ref, normb_ref,
                        o_ref, acc_ref, *, num_heads):
    d = pl.program_id(1)
    last = pl.num_programs(1) - 1

    bt, L, D = x_ref.shape
    M = bt * L
    H = num_heads
    hd = D // H

    @pl.when(d == 0)
    def _():
        acc_ref[...] = x_ref[...].reshape(M, D).astype(jnp.float32)

    x = acc_ref[...]                              # (M, D) fp32 residual stream

    # ---------------- attention ----------------
    # (1/sqrt(hd) is folded into the q columns of qkv_w / qkv_b at init time)
    h = _layernorm(x, ln1w_ref[0], ln1b_ref[0])
    qkv = (jnp.dot(h.astype(jnp.bfloat16), qkvw_ref[0],
                   preferred_element_type=jnp.float32) + qkvb_ref[0])   # (M, 3D)

    def heads(z):
        # (M, D) -> (H*bt, L, hd); flat batch index = h*bt + b (same for q/k/v)
        z3 = pltpu.einshape("mhd->hmd", z.reshape(M, H, hd))            # (H, M, hd)
        return z3.reshape(H * bt, L, hd).astype(jnp.bfloat16)

    q3 = heads(qkv[:, 0:D])
    k3 = heads(qkv[:, D:2 * D])
    v3 = heads(qkv[:, 2 * D:3 * D])

    s = jnp.einsum("bqd,bkd->bqk", q3, k3,
                   preferred_element_type=jnp.float32)                  # (H*bt, L, L)
    s = s - jnp.max(s, axis=-1, keepdims=True)
    p = jnp.exp(s)
    p = p / jnp.sum(p, axis=-1, keepdims=True)                          # exact divide

    o3 = jnp.einsum("bqk,bkd->bqd", p.astype(jnp.bfloat16), v3,
                    preferred_element_type=jnp.float32)                 # (H*bt, L, hd)
    o2 = pltpu.einshape("hmd->mhd", o3.reshape(H, M, hd)).reshape(M, D)
    attn = (jnp.dot(o2.astype(jnp.bfloat16), projw_ref[0],
                    preferred_element_type=jnp.float32) + projb_ref[0])
    x = x + attn                                   # dropout == 0.0 -> identity

    # ---------------- MLP ----------------
    h2 = _layernorm(x, ln2w_ref[0], ln2b_ref[0])
    h2 = (jnp.dot(h2.astype(jnp.bfloat16), fc1w_ref[0],
                  preferred_element_type=jnp.float32) + fc1b_ref[0])
    # TODO(synk): PyTorch nn.GELU default is erf-exact; tanh approximation used
    # here for robust Mosaic lowering (max abs delta ~1e-3).
    h2 = jax.nn.gelu(h2, approximate=True)
    h2 = (jnp.dot(h2.astype(jnp.bfloat16), fc2w_ref[0],
                  preferred_element_type=jnp.float32) + fc2b_ref[0])
    acc_ref[...] = x + h2

    @pl.when(d == last)
    def _():
        y = _layernorm(acc_ref[...], normw_ref[...], normb_ref[...])
        o_ref[...] = y.reshape(bt, L, D).astype(o_ref.dtype)


def encoder_blocks(x, blk, norm_w, norm_b, num_heads):
    B, L, D = x.shape
    depth = blk["qkv_w"].shape[0]
    Hid = blk["fc1_w"].shape[2]
    bt = _pick_bt(B, L)
    M = bt * L

    kernel = functools.partial(fused_blocks_kernel, num_heads=num_heads)

    def wspec(arr):
        nd = arr.ndim
        return pl.BlockSpec((1,) + arr.shape[1:],
                            lambda b, d, _nd=nd: (d,) + (0,) * (_nd - 1))

    def cspec(arr):
        return pl.BlockSpec(arr.shape, lambda b, d: (0,) * arr.ndim)

    # VMEM sizing (double-buffered streamed params + resident activations)
    w_bytes = 2 * 2 * (D * 3 * D + D * D + D * Hid + Hid * D)       # bf16 weights x2 buf
    p_bytes = 2 * 4 * (3 * D + D + Hid + D + 6 * D)                 # fp32 biases/LN x2 buf
    a_bytes = 4 * (3 * M * D                                        # acc + x block (2x)
                   + 2 * M * D                                      # resident output
                   + 2 * M * 3 * D                                  # qkv + head splits
                   + 2 * num_heads * bt * L * L                     # scores + probs
                   + 2 * M * Hid                                    # MLP hidden
                   + 4 * M * D)                                     # misc temporaries
    vmem_bytes = _vmem_limit(w_bytes + p_bytes + a_bytes + (8 << 20))
    # TODO(synk): at ViT-L scale on v7x (64 MiB VMEM) fc1/fc2 should additionally
    # be tiled along the hidden dim; unnecessary at these weight sizes.

    return pl.pallas_call(
        kernel,
        out_shape=jax.ShapeDtypeStruct((B, L, D), jnp.float32),
        grid=(B // bt, depth),
        in_specs=[
            pl.BlockSpec((bt, L, D), lambda b, d: (b, 0, 0)),
            wspec(blk["ln1_w"]), wspec(blk["ln1_b"]),
            wspec(blk["qkv_w"]), wspec(blk["qkv_b"]),
            wspec(blk["proj_w"]), wspec(blk["proj_b"]),
            wspec(blk["ln2_w"]), wspec(blk["ln2_b"]),
            wspec(blk["fc1_w"]), wspec(blk["fc1_b"]),
            wspec(blk["fc2_w"]), wspec(blk["fc2_b"]),
            cspec(norm_w), cspec(norm_b),
        ],
        out_specs=pl.BlockSpec((bt, L, D), lambda b, d: (b, 0, 0)),
        scratch_shapes=[pltpu.VMEM((M, D), jnp.float32)],
        compiler_params=pltpu.CompilerParams(
            dimension_semantics=("parallel", "arbitrary"),
            vmem_limit_bytes=vmem_bytes),
    )(x, blk["ln1_w"], blk["ln1_b"], blk["qkv_w"], blk["qkv_b"],
      blk["proj_w"], blk["proj_b"], blk["ln2_w"], blk["ln2_b"],
      blk["fc1_w"], blk["fc1_b"], blk["fc2_w"], blk["fc2_b"],
      norm_w, norm_b)


# ----------------------------------------------------------------------------
# Plain-JAX glue (matches the PyTorch module's non-hot-path logic)
# ----------------------------------------------------------------------------
def get_posembed(embed_dim, grid_size, temperature=10000.0):
    scale = 2.0 * math.pi
    num_pos_feats = embed_dim // 2
    y_embed, x_embed = jnp.meshgrid(
        jnp.arange(grid_size, dtype=jnp.float32),
        jnp.arange(grid_size, dtype=jnp.float32),
        indexing="ij",
    )
    y_embed = y_embed / (grid_size + 1e-6) * scale
    x_embed = x_embed / (grid_size + 1e-6) * scale
    dim_t = jnp.arange(num_pos_feats, dtype=jnp.float32)
    dim_t_ = jnp.floor(dim_t / 2.0) / num_pos_feats
    dim_t = temperature ** (2.0 * dim_t_)
    pos_x = x_embed[..., None] / dim_t
    pos_y = y_embed[..., None] / dim_t
    pos_x = jnp.stack(
        (jnp.sin(pos_x[..., 0::2]), jnp.cos(pos_x[..., 1::2])), axis=-1
    ).reshape(grid_size, grid_size, -1)
    pos_y = jnp.stack(
        (jnp.sin(pos_y[..., 0::2]), jnp.cos(pos_y[..., 1::2])), axis=-1
    ).reshape(grid_size, grid_size, -1)
    pos = jnp.concatenate((pos_y, pos_x), axis=-1).reshape(-1, embed_dim)
    return pos  # (num_patches, embed_dim)


def extract_patches(x, p):
    # x: (B, C, H, W) NCHW -> (B, N, C*p*p) bf16; (C, ph, pw) ordering matches
    # the flattened Conv2d weight (out, in, kh, kw).reshape(out, -1).
    # bf16 cast fuses into the XLA transpose that already rewrites HBM.
    B, C, H, W = x.shape
    gh, gw = H // p, W // p
    x = x.reshape(B, C, gh, p, gw, p)
    x = jnp.transpose(x, (0, 2, 4, 1, 3, 5))
    return x.reshape(B, gh * gw, C * p * p).astype(jnp.bfloat16)


def random_masking(x, mask_ratio, key):
    # TODO(synk): argsort/gather (data-dependent permutation) kept in plain JAX;
    # it is not a tile-friendly Pallas hot path.
    B, N, C = x.shape
    len_keep = int(N * (1 - mask_ratio))
    noise = jax.random.uniform(key, (B, N))
    ids_shuffle = jnp.argsort(noise, axis=1)
    ids_restore = jnp.argsort(ids_shuffle, axis=1)
    ids_keep = ids_shuffle[:, :len_keep]
    x_masked = jnp.take_along_axis(x, ids_keep[:, :, None], axis=1)
    mask = jnp.ones((B, N), dtype=jnp.float32)
    mask = mask.at[:, :len_keep].set(0.0)
    mask = jnp.take_along_axis(mask, ids_restore, axis=1)
    return x_masked, mask, ids_shuffle, ids_restore


# ----------------------------------------------------------------------------
# Parameter construction (deterministic, synthetic)
# ----------------------------------------------------------------------------
def xavier_uniform(key, shape):
    fan_in, fan_out = shape[0], shape[1]
    bound = math.sqrt(6.0 / (fan_in + fan_out))
    return jax.random.uniform(key, shape, jnp.float32, -bound, bound)


def init_params(key, img_size, patch_size, in_chans, dim, depth, num_heads,
                mlp_ratio):
    hidden = int(dim * mlp_ratio)
    K = in_chans * patch_size * patch_size
    grid_size = img_size // patch_size
    hd = dim // num_heads
    q_scale = 1.0 / math.sqrt(hd)

    keys = jax.random.split(key, 1 + depth * 4)

    def stack_w(offset, shape):
        return jnp.stack(
            [xavier_uniform(keys[1 + 4 * d + offset], shape) for d in range(depth)],
            axis=0)

    # Fold the 1/sqrt(hd) softmax scale into the q output-columns of qkv_w
    # (and conceptually qkv_b, which is zero) once, outside the hot path.
    qkv_w = stack_w(0, (dim, 3 * dim))
    col_scale = jnp.concatenate(
        [jnp.full((dim,), q_scale, jnp.float32),
         jnp.ones((2 * dim,), jnp.float32)])[None, None, :]
    qkv_w = (qkv_w * col_scale).astype(jnp.bfloat16)

    params = {
        "patch_w": xavier_uniform(keys[0], (K, dim)).astype(jnp.bfloat16),
        "patch_b": jnp.zeros((1, dim), jnp.float32),
        "pos": get_posembed(dim, grid_size),                    # (N, D), frozen
        "norm_w": jnp.ones((1, dim), jnp.float32),
        "norm_b": jnp.zeros((1, dim), jnp.float32),
        "blk": {
            "ln1_w": jnp.ones((depth, 1, dim), jnp.float32),
            "ln1_b": jnp.zeros((depth, 1, dim), jnp.float32),
            "qkv_w": qkv_w,
            "qkv_b": jnp.zeros((depth, 1, 3 * dim), jnp.float32),
            "proj_w": stack_w(1, (dim, dim)).astype(jnp.bfloat16),
            "proj_b": jnp.zeros((depth, 1, dim), jnp.float32),
            "ln2_w": jnp.ones((depth, 1, dim), jnp.float32),
            "ln2_b": jnp.zeros((depth, 1, dim), jnp.float32),
            "fc1_w": stack_w(2, (dim, hidden)).astype(jnp.bfloat16),
            "fc1_b": jnp.zeros((depth, 1, hidden), jnp.float32),
            "fc2_w": stack_w(3, (hidden, dim)).astype(jnp.bfloat16),
            "fc2_b": jnp.zeros((depth, 1, dim), jnp.float32),
        },
    }
    return params


# ----------------------------------------------------------------------------
# Full forward (mirrors MaeEncoder.forward)
# ----------------------------------------------------------------------------
def mae_encoder_forward(x_nchw, params, *, patch_size, num_heads, mask_ratio,
                        mask_key):
    patches = extract_patches(x_nchw, patch_size)                        # glue
    x = patch_embed_pos(patches, params["patch_w"], params["patch_b"],
                        params["pos"])                                   # Pallas
    x, mask, ids_shuffle, ids_restore = random_masking(x, mask_ratio, mask_key)
    x = encoder_blocks(x, params["blk"], params["norm_w"], params["norm_b"],
                       num_heads)                                        # Pallas (fused)
    return x, mask, ids_shuffle, ids_restore


# ----------------------------------------------------------------------------
if __name__ == "__main__":
    # Small config consistent with the module's constructor.
    img_size = 16
    patch_size = 4
    in_chans = 4
    patch_embed_dim = 32
    depth = 2
    num_heads = 4
    mlp_ratio = 2.0
    mask_ratio = 0.75
    batch = 2

    root = jax.random.PRNGKey(0)
    k_param, k_input, k_mask = jax.random.split(root, 3)

    params = init_params(k_param, img_size, patch_size, in_chans,
                         patch_embed_dim, depth, num_heads, mlp_ratio)
    x = jax.random.normal(k_input, (batch, in_chans, img_size, img_size),
                          jnp.float32)  # NCHW, like PyTorch

    out, mask, ids_shuffle, ids_restore = mae_encoder_forward(
        x, params,
        patch_size=patch_size, num_heads=num_heads,
        mask_ratio=mask_ratio, mask_key=k_mask)

    out = jax.block_until_ready(out)
    mask = jax.block_until_ready(mask)
    ids_shuffle = jax.block_until_ready(ids_shuffle)
    ids_restore = jax.block_until_ready(ids_restore)

    num_patches = (img_size // patch_size) ** 2
    len_keep = int(num_patches * (1 - mask_ratio))
    assert out.shape == (batch, len_keep, patch_embed_dim)
    assert mask.shape == (batch, num_patches)
    assert ids_shuffle.shape == (batch, num_patches)
    assert ids_restore.shape == (batch, num_patches)
    assert bool(jnp.all(jnp.isfinite(out)))

    print("KERNEL_OK")
</pallas_src>

<mosaic_0001>
module attributes {stable_mosaic.version = 11 : i64} {
  func.func @patch_embed_kernel(%arg0: i32, %arg1: memref<2x16x64xbf16, #tpu.memory_space<vmem>>, %arg2: memref<64x32xbf16, #tpu.memory_space<vmem>>, %arg3: memref<1x32xf32, #tpu.memory_space<vmem>>, %arg4: memref<16x32xf32, #tpu.memory_space<vmem>>, %arg5: memref<2x16x32xf32, #tpu.memory_space<vmem>>) attributes {dimension_semantics = [#tpu.dimension_semantics<parallel>], iteration_bounds = array<i64: 1>, scalar_prefetch = 0 : i64, scratch_operands = 0 : i64, tpu.core_type = #tpu.core_type<tc>, window_params = [{transform_indices = @transform_0, window_bounds = array<i64: 2, 16, 64>}, {pipeline_mode = #tpu.pipeline_mode<synchronous>, transform_indices = @transform_1, window_bounds = array<i64: 64, 32>}, {pipeline_mode = #tpu.pipeline_mode<synchronous>, transform_indices = @transform_2, window_bounds = array<i64: 1, 32>}, {pipeline_mode = #tpu.pipeline_mode<synchronous>, transform_indices = @transform_3, window_bounds = array<i64: 16, 32>}, {transform_indices = @transform_4, window_bounds = array<i64: 2, 16, 32>}]} {
    %c0 = arith.constant 0 : index
    %c0_0 = arith.constant 0 : index
    %c0_1 = arith.constant 0 : index
    %0 = vector.load %arg1[%c0, %c0_0, %c0_1] : memref<2x16x64xbf16, #tpu.memory_space<vmem>>, vector<2x16x64xbf16>
    %1 = vector.shape_cast %0 : vector<2x16x64xbf16> to vector<32x64xbf16>
    %c0_2 = arith.constant 0 : index
    %c0_3 = arith.constant 0 : index
    %2 = vector.load %arg2[%c0_2, %c0_3] : memref<64x32xbf16, #tpu.memory_space<vmem>>, vector<64x32xbf16>
    %cst = arith.constant dense<0.000000e+00> : vector<32x32xf32>
    %3 = tpu.matmul %1, %2, %cst {dimension_numbers = #tpu.dot_dimension_numbers<[1], [0], [0], [1], [0, 0, 1, 1], [], []>} : vector<32x64xbf16>, vector<64x32xbf16>, vector<32x32xf32> -> vector<32x32xf32>
    %c0_4 = arith.constant 0 : index
    %c0_5 = arith.constant 0 : index
    %4 = vector.load %arg4[%c0_4, %c0_5] : memref<16x32xf32, #tpu.memory_space<vmem>>, vector<16x32xf32>
    %c0_6 = arith.constant 0 : index
    %c0_7 = arith.constant 0 : index
    %5 = vector.load %arg3[%c0_6, %c0_7] : memref<1x32xf32, #tpu.memory_space<vmem>>, vector<1x32xf32>
    %6 = vector.broadcast %5 : vector<1x32xf32> to vector<16x32xf32>
    %7 = arith.addf %4, %6 : vector<16x32xf32>
    %8 = vector.shape_cast %3 : vector<32x32xf32> to vector<2x16x32xf32>
    %9 = vector.shape_cast %7 : vector<16x32xf32> to vector<1x16x32xf32>
    %10 = vector.broadcast %9 : vector<1x16x32xf32> to vector<2x16x32xf32>
    %11 = arith.addf %8, %10 : vector<2x16x32xf32>
    %c0_8 = arith.constant 0 : index
    %c0_9 = arith.constant 0 : index
    %c0_10 = arith.constant 0 : index
    %12 = vector.load %arg5[%c0_8, %c0_9, %c0_10] : memref<2x16x32xf32, #tpu.memory_space<vmem>>, vector<2x16x32xf32>
    tpu.vector_store %arg5[%c0_8, %c0_9, %c0_10], %11 {strides = array<i32>} : memref<2x16x32xf32, #tpu.memory_space<vmem>>, vector<2x16x32xf32>,
    return
  }
  func.func @transform_0(%arg0: i32) -> (i32, i32, i32) {
    %c0_i32 = arith.constant 0 : i32
    %c0_i32_0 = arith.constant 0 : i32
    %c0_i32_1 = arith.constant 0 : i32
    return %arg0, %c0_i32, %c0_i32_0 : i32, i32, i32
  }
  func.func @transform_1(%arg0: i32) -> (i32, i32) {
    %c0_i32 = arith.constant 0 : i32
    %c0_i32_0 = arith.constant 0 : i32
    %c0_i32_1 = arith.constant 0 : i32
    return %c0_i32, %c0_i32_0 : i32, i32
  }
  func.func @transform_2(%arg0: i32) -> (i32, i32) {
    %c0_i32 = arith.constant 0 : i32
    %c0_i32_0 = arith.constant 0 : i32
    %c0_i32_1 = arith.constant 0 : i32
    return %c0_i32, %c0_i32_0 : i32, i32
  }
  func.func @transform_3(%arg0: i32) -> (i32, i32) {
    %c0_i32 = arith.constant 0 : i32
    %c0_i32_0 = arith.constant 0 : i32
    %c0_i32_1 = arith.constant 0 : i32
    return %c0_i32, %c0_i32_0 : i32, i32
  }
  func.func @transform_4(%arg0: i32) -> (i32, i32, i32) {
    %c0_i32 = arith.constant 0 : i32
    %c0_i32_0 = arith.constant 0 : i32
    %c0_i32_1 = arith.constant 0 : i32
    return %arg0, %c0_i32, %c0_i32_0 : i32, i32, i32
  }
}

</mosaic_0001>

<llo_original>
// kernel: tpu_custom_call.1
$region0: #{tpu_custom_call.1}
  #allocation0 [shape = 'u32[]', space=smem, size = 0x4, offset = 0x4, fixed_abs, tag = 'smem constant byte address 0x4 - core index']
  #allocation1 [shape = 'u32[72,128]{1,0:T(1,128)}', space=vmem, size = 0x9000, scoped, tag = 'internal scratch']
  %s0 = inlined_call_operand.vmem [shape: bf16[2,16,64], index: 0, kind: input, shape index: {}]
  %s1 = inlined_call_operand.vmem [shape: bf16[64,32], index: 1, kind: input, shape index: {}]
  %s2 = inlined_call_operand.vmem [shape: f32[1,32], index: 2, kind: input, shape index: {}]
  %s3 = inlined_call_operand.vmem [shape: f32[16,32], index: 3, kind: input, shape index: {}]
  %s4 = inlined_call_operand.hbm [shape: f32[2,16,32], index: 4, kind: output, shape index: {}]
  %s5 = sld [smem:[#allocation0]]
  $region26: #{tpu_custom_call.1} parent=0
    _
  %s7 = ssub.s32 1, %s5
  %s8 = scalar_select 0, %s7, %s5
  $region1: #{tpu_custom_call.1} parent=0
    #allocation2 [shape = 'u8[16384]{0}', space=vmem, size = 0x4000, scoped, tag = 'output window, operand 0, single buffered']
    #allocation3 [shape = 's32[1]{0}', space=sflag, size = 0x4, scoped, tag = 'scoped memory for tpu_custom_call.1']
    %9 = vsyncpa [#allocation3], 0
    // Predicated region
    $region2: #{tpu_custom_call.1} parent=1 // pred_check
      _
    $region3: #{tpu_custom_call.1} parent=1 // pred_check_branch
      %11 = sbr.rel (0) target = $region5
    $region4: #{tpu_custom_call.1} parent=1 // pred_region
      _
    $region5: #{tpu_custom_call.1} parent=1 // pred_fallthru
      _
    // Predicated region
    $region6: #{tpu_custom_call.1} parent=1 // pred_check
      _
    $region7: #{tpu_custom_call.1} parent=1 // pred_check_branch
      %13 = sbr.rel (0) target = $region9
    $region8: #{tpu_custom_call.1} parent=1 // pred_region
      _
    $region9: #{tpu_custom_call.1} parent=1 // pred_fallthru
      _
    // Predicated region
    $region10: #{tpu_custom_call.1} parent=1 // pred_check
      _
    $region11: #{tpu_custom_call.1} parent=1 // pred_check_branch
      %15 = sbr.rel (0) target = $region13
    $region12: #{tpu_custom_call.1} parent=1 // pred_region
      _
    $region13: #{tpu_custom_call.1} parent=1 // pred_fallthru
      _
    // Predicated region
    $region14: #{tpu_custom_call.1} parent=1 // pred_check
      _
    $region15: #{tpu_custom_call.1} parent=1 // pred_check_branch
      %17 = sbr.rel (0) target = $region17
    $region16: #{tpu_custom_call.1} parent=1 // pred_region
      _
    $region17: #{tpu_custom_call.1} parent=1 // pred_fallthru
      _
    %v19 = vld [vmem:[%s0] sm:$0xf]
    %v20 = vld [vmem:[%s0 + $0x4] sm:$0xf]
    %v21 = vld [vmem:[%s0 + $0x8] sm:$0xf]
    %v22 = vld [vmem:[%s0 + $0xc] sm:$0xf]
    %v23 = vld [vmem:[%s1] sm:$0xf]
    %v24 = vld [vmem:[%s1 + $0x4] sm:$0xf]
    %v25 = vld [vmem:[%s1 + $0x8] sm:$0xf]
    %v26 = vld [vmem:[%s1 + $0xc] sm:$0xf]
    %v27 = vld [vmem:[%s1 + $0x10] sm:$0xf]
    %v28 = vld [vmem:[%s1 + $0x14] sm:$0xf]
    %v29 = vld [vmem:[%s1 + $0x18] sm:$0xf]
    %v30 = vld [vmem:[%s1 + $0x1c] sm:$0xf]
    %v35 = vunpack.c.l.b16 %v19
    %v36 = vunpack.c.l.b16 %v20
    %v37 = vunpack.c.l.b16 %v21
    %v38 = vunpack.c.l.b16 %v22
    %v39 = vpack.c.b16 %v36, %v35
    %v40 = vpack.c.b16 %v38, %v37
    %v49 = vunpack.c.l.b16 %v23
    %v50 = vunpack.c.l.b16 %v24
    %v51 = vunpack.c.l.b16 %v25
    %v52 = vunpack.c.l.b16 %v26
    %v53 = vunpack.c.l.b16 %v27
    %v54 = vunpack.c.l.b16 %v28
    %v55 = vunpack.c.l.b16 %v29
    %v56 = vunpack.c.l.b16 %v30
    %v57 = vpack.c.b16 %v50, %v49
    %v58 = vpack.c.b16 %v52, %v51
    %v59 = vpack.c.b16 %v54, %v53
    %v60 = vpack.c.b16 %v56, %v55
    %vm65 = vcmask 523264
    %v67 = vsel %vm65, %v39, 0
    %v70 = vsel %vm65, %v40, 0
    %72 = vmatpush.bf16.msra.mxu0 0
    %73 = vmatpush.bf16.msra.mxu0 0
    %74 = vmatpush.bf16.msra.mxu0 0
    %75 = vmatpush.bf16.msra.mxu0 0
    %76 = vmatpush.bf16.msra.mxu0 %v60
    %77 = vmatpush.bf16.msra.mxu0 %v59
    %78 = vmatpush.bf16.msra.mxu0 %v58
    %79 = vmatpush.bf16.msra.mxu0 %v57
    %80 = vmatmul.bf16.gmra.mxu0 %v67
    %v81 = vpop.f32.mrf.mxu0
    %v82 = vadd.f32 0.0, %v81
    %v83 = vpop.f32.mrf.mxu0
    %v84 = vadd.f32 0.0, %v83
    %85 = vmatmul.bf16.gmra.mxu0 %v70
    %v86 = vpop.f32.mrf.mxu0
    %v87 = vadd.f32 0.0, %v86
    %v88 = vpop.f32.mrf.mxu0
    %v89 = vadd.f32 0.0, %v88
    %90 = vdwg.mxu0
    %v91 = vld [vmem:[%s3] sm:$0xff]
    %v92 = vld [vmem:[%s3 + $0x8] sm:$0xff]
    %v93 = vld [vmem:[%s2] sm:$0x1]
    %v95 = vperm.slane %v93, 0
    %v97 = vadd.f32 %v91, %v95
    %v98 = vadd.f32 %v92, %v95
    %v99 = vadd.f32 %v82, %v97
    %v100 = vadd.f32 %v84, %v98
    %v101 = vadd.f32 %v87, %v97
    %v102 = vadd.f32 %v89, %v98
    %vm103 = vcmask 261120
    %104 = vst.msk [vmem:[#allocation2] sm:$0xff] %vm103, %v99
    %105 = vst.msk [vmem:[#allocation2 + $0x8] sm:$0xff] %vm103, %v100
    %106 = vst.msk [vmem:[#allocation2 + $0x10] sm:$0xff] %vm103, %v101
    %107 = vst.msk [vmem:[#allocation2 + $0x18] sm:$0xff] %vm103, %v102
    // Predicated region
    $region18: #{tpu_custom_call.1} parent=1 // pred_check
      _
    $region19: #{tpu_custom_call.1} parent=1 // pred_check_branch
      %109 = sbr.rel (0) target = $region21
    $region20: #{tpu_custom_call.1} parent=1 // pred_region
      %111 = vsyncadd [#allocation3], 0
      %s112 = sshll.u32 [#allocation2], 4
      %s113 = int_to_ptr.vmem [resolvable:$true] %s112
      %s114 = sshll.u32 %s4, 4
      %s115 = int_to_ptr.hbm [resolvable:$true] %s114
      %120 = dma.vmem_to_hbm [thread:$0]  %s113, 512, %s115, [#allocation3], 128, 128, 8
    $region21: #{tpu_custom_call.1} parent=1 // pred_fallthru
      _
    // Predicated region
    $region22: #{tpu_custom_call.1} parent=1 // pred_check
      _
    $region23: #{tpu_custom_call.1} parent=1 // pred_check_branch
      %122 = sbr.rel (0) target = $region25
    $region24: #{tpu_custom_call.1} parent=1 // pred_region
      %124 = dma.done [#allocation3], 512
    $region25: #{tpu_custom_call.1} parent=1 // pred_fallthru
      _
    %125 = vsyncpa [#allocation3], 1

</llo_original>
